<compile_context>
chip_gen: v7x
topology: tpu7x:2x2x1
jax: 0.10.0
libtpu: 0.0.40
codegen_flags: <defaults>
</compile_context>

<pallas_src>
import functools

import jax
import jax.numpy as jnp
from jax.experimental import pallas as pl
from jax.experimental.pallas import tpu as pltpu


def _focal_loss_kernel(x_ref, t_ref, out_ref, acc_ref, *,
                       gamma, hw, tile, needs_mask):
    j = pl.program_id(1)

    @pl.when(j == 0)
    def _():
        acc_ref[...] = jnp.zeros_like(acc_ref)

    p = x_ref[...].astype(jnp.float32)          # (bn, C, tile), HW on lanes
    t = t_ref[...].astype(jnp.int32)            # (bn, 1, tile)

    cls = jax.lax.broadcasted_iota(jnp.int32, p.shape, 1)
    sel = cls == t                              # one-hot target mask (bn, C, tile)
    if needs_mask:
        lane = jax.lax.broadcasted_iota(jnp.int32, p.shape, 2)
        sel = jnp.logical_and(sel, (j * tile + lane) < hw)

    # Non-target / out-of-range entries -> p = 1, so (1-p)^g * log(p) == 0.
    # (Also neutralizes garbage in the padded part of a remainder block.)
    p_m = jnp.where(sel, p, 1.0)
    one_minus = 1.0 - p_m

    g = float(gamma)
    if g.is_integer() and 0 <= int(g) <= 8:
        gi = int(g)
        if gi == 0:
            mod = jnp.ones_like(one_minus)
        else:
            mod = one_minus                     # pure VPU multiply chain, no pow
            for _ in range(gi - 1):
                mod = mod * one_minus
    else:
        mod = jnp.power(one_minus, jnp.float32(g))

    acc_ref[...] += mod * jnp.log(p_m)          # one EUP log per element

    @pl.when(j == pl.num_programs(1) - 1)
    def _():
        # Single cross-lane / cross-class reduction per batch row, once per N.
        s = jnp.sum(acc_ref[...], axis=2, keepdims=True)    # (bn, C, 1)
        out_ref[...] = -jnp.sum(s, axis=1, keepdims=True)   # (bn, 1, 1)


def focal_loss(input_nchw, target_nhw, *, gamma=2.0,
               block_bytes=1 << 20, max_lanes=None):
    """Pallas implementation of FocalLoss.forward ('mean' reduction).

    input_nchw: (N, C, H, W) probabilities (float32 or bfloat16)
    target_nhw: (N, H, W)    integer class indices
    Returns the scalar float32 loss.
    """
    # TODO(synk): ignore_index masking not implemented (module default is None).
    N, C, H, W = input_nchw.shape
    HW = H * W

    x = input_nchw.reshape(N, C, HW)            # free row-major reshape, no copy
    t_dtype = jnp.int8 if C <= 127 else jnp.int32
    t = target_nhw.reshape(N, 1, HW).astype(t_dtype)

    # ---- tile selection --------------------------------------------------
    x_itemsize = x.dtype.itemsize
    pad_c = -(-C // 8) * 8
    # Per-lane VMEM estimate: x block (double-buffered, C padded to 8 sublanes)
    # + int8 target block (double-buffered, padded to 32 sublanes) + f32 acc.
    per_lane_vmem = 2 * pad_c * x_itemsize + 2 * 32 + pad_c * 4
    vmem_budget = 12 << 20                      # safe under every scoped default
    lanes_cap = max(128, vmem_budget // per_lane_vmem)
    lanes_target = max(128, -(-block_bytes // (C * x_itemsize)))
    lanes = min(lanes_target, lanes_cap)        # total lanes (bn * tile) per step
    if max_lanes is not None:
        lanes = max(128, min(lanes, max_lanes))

    if HW <= lanes:
        tile = HW                               # full spatial extent; fold batches
        bn = 1
        for d in range(1, min(N, max(1, lanes // HW)) + 1):
            if N % d == 0:
                bn = d                          # largest divisor of N that fits
    else:
        tile = max(128, (lanes // 128) * 128)   # lane-aligned tile
        bn = 1

    n_hw_tiles = pl.cdiv(HW, tile)
    needs_mask = (HW % tile) != 0
    total = N * HW

    kernel = functools.partial(_focal_loss_kernel, gamma=gamma, hw=HW,
                               tile=tile, needs_mask=needs_mask)

    # TODO(synk): if a profile shows exposed DMA on short grids, add
    # pipeline_mode=pl.Buffered(3) to the two in_specs.
    partials = pl.pallas_call(
        kernel,
        out_shape=jax.ShapeDtypeStruct((N, 1, 1), jnp.float32),
        grid_spec=pltpu.PrefetchScalarGridSpec(
            num_scalar_prefetch=0,
            grid=(N // bn, n_hw_tiles),
            in_specs=[
                pl.BlockSpec((bn, C, tile), lambda n, j: (n, 0, j)),
                pl.BlockSpec((bn, 1, tile), lambda n, j: (n, 0, j)),
            ],
            out_specs=pl.BlockSpec((bn, 1, 1), lambda n, j: (n, 0, 0)),
            scratch_shapes=[pltpu.VMEM((bn, C, tile), jnp.float32)],
        ),
        compiler_params=pltpu.CompilerParams(
            dimension_semantics=("parallel", "arbitrary")),
    )(x, t)

    return jnp.sum(partials) / jnp.float32(total)


def focal_loss_ref(input_nchw, target_nhw, *, gamma=2.0):
    """Pure-JAX reference mirroring the PyTorch module."""
    p = input_nchw.astype(jnp.float32)
    mod_logp = jnp.power(1.0 - p, gamma) * jnp.log(p)        # (N, C, H, W)
    one_hot = jax.nn.one_hot(target_nhw, p.shape[1], axis=1, dtype=jnp.float32)
    per_elem = -jnp.sum(mod_logp * one_hot, axis=1)          # (N, H, W)
    return jnp.mean(per_elem)


if __name__ == "__main__":
    key = jax.random.PRNGKey(0)
    k1, k2, k3, k4 = jax.random.split(key, 4)

    # Main case: N=2, C=4, H=W=16 (HW=256). Default tiling folds both batch
    # rows into a single grid step (bn=2, tile=256).
    N, C, H, W = 2, 4, 16, 16
    logits = jax.random.normal(k1, (N, C, H, W), dtype=jnp.float32)
    probs = jax.nn.softmax(logits, axis=1)       # module expects probabilities
    target = jax.random.randint(k2, (N, H, W), 0, C, dtype=jnp.int32)

    loss = jax.block_until_ready(focal_loss(probs, target, gamma=2.0))
    ref = focal_loss_ref(probs, target, gamma=2.0)
    assert jnp.allclose(loss, ref, rtol=1e-4, atol=1e-5), (loss, ref)

    # Ragged case: HW=169 with a forced 128-lane tile exercises the multi-tile
    # accumulation path, the remainder-lane mask, and the parallel batch axis.
    H2 = W2 = 13
    logits2 = jax.random.normal(k3, (N, C, H2, W2), dtype=jnp.float32)
    probs2 = jax.nn.softmax(logits2, axis=1)
    target2 = jax.random.randint(k4, (N, H2, W2), 0, C, dtype=jnp.int32)

    loss2 = jax.block_until_ready(
        focal_loss(probs2, target2, gamma=2.0, max_lanes=128))
    ref2 = focal_loss_ref(probs2, target2, gamma=2.0)
    assert jnp.allclose(loss2, ref2, rtol=1e-4, atol=1e-5), (loss2, ref2)

    # bf16 probabilities: no wrapper upcast, kernel upcasts to f32 in VMEM.
    probs_bf16 = probs.astype(jnp.bfloat16)
    loss3 = jax.block_until_ready(focal_loss(probs_bf16, target, gamma=2.0))
    ref3 = focal_loss_ref(probs_bf16, target, gamma=2.0)
    assert jnp.allclose(loss3, ref3, rtol=1e-3, atol=1e-4), (loss3, ref3)

    print("KERNEL_OK")
</pallas_src>

<mosaic_0001>
module attributes {stable_mosaic.version = 11 : i64} {
  func.func @_focal_loss_kernel(%arg0: i32, %arg1: i32, %arg2: memref<2x4x256xf32, #tpu.memory_space<vmem>>, %arg3: memref<2x1x256xi8, #tpu.memory_space<vmem>>, %arg4: memref<2x1x1xf32, #tpu.memory_space<vmem>>, %arg5: memref<2x4x256xf32, #tpu.memory_space<vmem>>) attributes {dimension_semantics = [#tpu.dimension_semantics<parallel>, #tpu.dimension_semantics<arbitrary>], iteration_bounds = array<i64: 1, 1>, scalar_prefetch = 0 : i64, scratch_operands = 1 : i64, tpu.core_type = #tpu.core_type<tc>, window_params = [{transform_indices = @transform_0, window_bounds = array<i64: 2, 4, 256>}, {transform_indices = @transform_1, window_bounds = array<i64: 2, 1, 256>}, {transform_indices = @transform_2, window_bounds = array<i64: 2, 1, 1>}]} {
    %c0_i32 = arith.constant 0 : i32
    %0 = arith.cmpi eq, %arg1, %c0_i32 : i32
    %1 = arith.extui %0 : i1 to i32
    %c0_i32_0 = arith.constant 0 : i32
    %2 = arith.cmpi ne, %1, %c0_i32_0 : i32
    scf.if %2 {
      %cst_15 = arith.constant 0.000000e+00 : f32
      %22 = vector.broadcast %cst_15 : f32 to vector<2x4x256xf32>
      %c0_16 = arith.constant 0 : index
      %c0_17 = arith.constant 0 : index
      %c0_18 = arith.constant 0 : index
      %23 = vector.load %arg5[%c0_16, %c0_17, %c0_18] : memref<2x4x256xf32, #tpu.memory_space<vmem>>, vector<2x4x256xf32>
      tpu.vector_store %arg5[%c0_16, %c0_17, %c0_18], %22 {strides = array<i32>} : memref<2x4x256xf32, #tpu.memory_space<vmem>>, vector<2x4x256xf32>,
    } else {
    }
    %c0 = arith.constant 0 : index
    %c0_1 = arith.constant 0 : index
    %c0_2 = arith.constant 0 : index
    %3 = vector.load %arg2[%c0, %c0_1, %c0_2] : memref<2x4x256xf32, #tpu.memory_space<vmem>>, vector<2x4x256xf32>
    %c0_3 = arith.constant 0 : index
    %c0_4 = arith.constant 0 : index
    %c0_5 = arith.constant 0 : index
    %4 = vector.load %arg3[%c0_3, %c0_4, %c0_5] : memref<2x1x256xi8, #tpu.memory_space<vmem>>, vector<2x1x256xi8>
    %5 = arith.extsi %4 : vector<2x1x256xi8> to vector<2x1x256xi32>
    %6 = tpu.iota {dimensions = array<i32: 1>} : vector<2x4x256xi32>
    %7 = vector.broadcast %5 : vector<2x1x256xi32> to vector<2x4x256xi32>
    %8 = arith.cmpi eq, %6, %7 : vector<2x4x256xi32>
    %cst = arith.constant 1.000000e+00 : f32
    %9 = vector.broadcast %cst : f32 to vector<2x4x256xf32>
    %10 = arith.select %8, %3, %9 : vector<2x4x256xi1>, vector<2x4x256xf32>
    %cst_6 = arith.constant 1.000000e+00 : f32
    %11 = vector.broadcast %cst_6 : f32 to vector<2x4x256xf32>
    %12 = arith.subf %11, %10 : vector<2x4x256xf32>
    %13 = arith.mulf %12, %12 : vector<2x4x256xf32>
    %c0_7 = arith.constant 0 : index
    %c0_8 = arith.constant 0 : index
    %c0_9 = arith.constant 0 : index
    %14 = vector.load %arg5[%c0_7, %c0_8, %c0_9] : memref<2x4x256xf32, #tpu.memory_space<vmem>>, vector<2x4x256xf32>
    %15 = math.log %10 : vector<2x4x256xf32>
    %16 = arith.mulf %13, %15 : vector<2x4x256xf32>
    %17 = arith.addf %14, %16 : vector<2x4x256xf32>
    %c0_10 = arith.constant 0 : index
    %c0_11 = arith.constant 0 : index
    %c0_12 = arith.constant 0 : index
    %18 = vector.load %arg5[%c0_10, %c0_11, %c0_12] : memref<2x4x256xf32, #tpu.memory_space<vmem>>, vector<2x4x256xf32>
    tpu.vector_store %arg5[%c0_10, %c0_11, %c0_12], %17 {strides = array<i32>} : memref<2x4x256xf32, #tpu.memory_space<vmem>>, vector<2x4x256xf32>,
    %c0_i32_13 = arith.constant 0 : i32
    %19 = arith.cmpi eq, %arg1, %c0_i32_13 : i32
    %20 = arith.extui %19 : i1 to i32
    %c0_i32_14 = arith.constant 0 : i32
    %21 = arith.cmpi ne, %20, %c0_i32_14 : i32
    scf.if %21 {
      %c0_15 = arith.constant 0 : index
      %c0_16 = arith.constant 0 : index
      %c0_17 = arith.constant 0 : index
      %22 = vector.load %arg5[%c0_15, %c0_16, %c0_17] : memref<2x4x256xf32, #tpu.memory_space<vmem>>, vector<2x4x256xf32>
      %cst_18 = arith.constant dense<0.000000e+00> : vector<2x4xf32>
      %23 = vector.multi_reduction <add>, %22, %cst_18 [2] : vector<2x4x256xf32> to vector<2x4xf32>
      %24 = vector.shape_cast %23 : vector<2x4xf32> to vector<2x4x1xf32>
      %cst_19 = arith.constant dense<0.000000e+00> : vector<2x1xf32>
      %25 = vector.multi_reduction <add>, %24, %cst_19 [1] : vector<2x4x1xf32> to vector<2x1xf32>
      %26 = vector.shape_cast %25 : vector<2x1xf32> to vector<2x1x1xf32>
      %cst_20 = arith.constant 0.000000e+00 : f32
      %27 = vector.broadcast %cst_20 : f32 to vector<2x1x1xf32>
      %28 = arith.subf %27, %26 : vector<2x1x1xf32>
      %c0_21 = arith.constant 0 : index
      %c0_22 = arith.constant 0 : index
      %c0_23 = arith.constant 0 : index
      %29 = vector.load %arg4[%c0_21, %c0_22, %c0_23] : memref<2x1x1xf32, #tpu.memory_space<vmem>>, vector<2x1x1xf32>
      tpu.vector_store %arg4[%c0_21, %c0_22, %c0_23], %28 {strides = array<i32>} : memref<2x1x1xf32, #tpu.memory_space<vmem>>, vector<2x1x1xf32>,
    } else {
    }
    return
  }
  func.func @transform_0(%arg0: i32, %arg1: i32) -> (i32, i32, i32) {
    %c0_i32 = arith.constant 0 : i32
    %c0_i32_0 = arith.constant 0 : i32
    return %arg0, %c0_i32, %arg1 : i32, i32, i32
  }
  func.func @transform_1(%arg0: i32, %arg1: i32) -> (i32, i32, i32) {
    %c0_i32 = arith.constant 0 : i32
    %c0_i32_0 = arith.constant 0 : i32
    return %arg0, %c0_i32, %arg1 : i32, i32, i32
  }
  func.func @transform_2(%arg0: i32, %arg1: i32) -> (i32, i32, i32) {
    %c0_i32 = arith.constant 0 : i32
    %c0_i32_0 = arith.constant 0 : i32
    %c0_i32_1 = arith.constant 0 : i32
    return %arg0, %c0_i32, %c0_i32_0 : i32, i32, i32
  }
}

</mosaic_0001>

<llo_original>
// kernel: tpu_custom_call.1
$region0: #{tpu_custom_call.1}
  #allocation0 [shape = 'u32[]', space=smem, size = 0x4, offset = 0x4, fixed_abs, tag = 'smem constant byte address 0x4 - core index']
  #allocation1 [shape = 'u32[144,128]{1,0:T(1,128)}', space=vmem, size = 0x12000, scoped, tag = 'internal scratch']
  #allocation2 [shape = 'f32[2,4,256]{2,1,0:T(4,128)}', space=vmem, size = 0x2000, scoped, tag = 'scratch operand']
  %s0 = inlined_call_operand.hbm [shape: f32[2,4,256], index: 0, kind: input, shape index: {}]
  %s1 = inlined_call_operand.vmem [shape: s8[2,1,256], index: 1, kind: input, shape index: {}]
  %s2 = inlined_call_operand.vmem [shape: f32[2,1,1], index: 2, kind: output, shape index: {}]
  %s3 = sld [smem:[#allocation0]]
  $region30: #{tpu_custom_call.1} parent=0
    _
  %s5 = ssub.s32 1, %s3
  %s6 = scalar_select 0, %s5, %s3
  $region1: #{tpu_custom_call.1} parent=0
    #allocation3 [shape = 'u8[8192]{0}', space=vmem, size = 0x2000, scoped, tag = 'input window, operand 0, single buffered']
    #allocation4 [shape = 's32[1]{0}', space=sflag, size = 0x4, scoped, tag = 'scoped memory for tpu_custom_call.1']
    %7 = vsyncpa [#allocation4], 0
    // Predicated region
    $region2: #{tpu_custom_call.1} parent=1 // pred_check
      _
    $region3: #{tpu_custom_call.1} parent=1 // pred_check_branch
      %9 = sbr.rel (0) target = $region5
    $region4: #{tpu_custom_call.1} parent=1 // pred_region
      %s11 = ssub.s32 256, 256
      %12 = vsyncadd [#allocation4], %s11
      %s13 = sshll.u32 [#allocation3], 4
      %s14 = int_to_ptr.vmem [resolvable:$true] %s13
      %19 = dma.hbm_to_vmem [thread:$0]  %s0, 256, %s14, [#allocation4], 128, 128, 8
    $region5: #{tpu_custom_call.1} parent=1 // pred_fallthru
      _
    // Predicated region
    $region6: #{tpu_custom_call.1} parent=1 // pred_check
      _
    $region7: #{tpu_custom_call.1} parent=1 // pred_check_branch
      %21 = sbr.rel (0) target = $region9
    $region8: #{tpu_custom_call.1} parent=1 // pred_region
      _
    $region9: #{tpu_custom_call.1} parent=1 // pred_fallthru
      _
    // Predicated region
    $region10: #{tpu_custom_call.1} parent=1 // pred_check
      _
    $region11: #{tpu_custom_call.1} parent=1 // pred_check_branch
      %23 = sbr.rel (0) target = $region13
    $region12: #{tpu_custom_call.1} parent=1 // pred_region
      %24 = dma.done [#allocation4], 256
    $region13: #{tpu_custom_call.1} parent=1 // pred_fallthru
      _
    %p25 = scmp.eq.s32.totalorder 0, 0
    // Predicated region
    $region14: #{tpu_custom_call.1} parent=1 // pred_check
      %p26 = pneg %p25
    $region15: #{tpu_custom_call.1} parent=1 // pred_check_branch
      %28 = sbr.rel (%p26) target = $region17
    $region16: #{tpu_custom_call.1} parent=1 // pred_region
      %29 = vst [vmem:[#allocation2] sm:$0xff] 0.0
      %30 = vst [vmem:[#allocation2 + $0x8] sm:$0xff] 0.0
    $region17: #{tpu_custom_call.1} parent=1 // pred_fallthru
      _
    %v31 = vld [vmem:[#allocation3] sm:$0xff]
    %v32 = vld [vmem:[#allocation3 + $0x8] sm:$0xff]
    %v33 = vld [vmem:[%s1] sm:$0x3]
    %v34 = vld [vmem:[%s1 + $0x2] sm:$0x3]
    %v35 = vunpack.c.0.s8 %v33
    %v36 = vunpack.c.0.s8 %v34
    %v37 = vlaneseq
    %v38 = vshrl.u32 %v37, 7
    %v39 = vlaneseq
    %v40 = vshrl.u32 %v39, 7
    %v41 = vsub.s32 0, %v40
    %v42 = vrot.slane %v35, %v41
    %v43 = vlaneseq
    %v44 = vshrl.u32 %v43, 7
    %v45 = vsub.s32 4, %v44
    %v46 = vrot.slane %v35, %v45
    %v47 = vlaneseq
    %v48 = vshrl.u32 %v47, 7
    %v49 = vsub.s32 0, %v48
    %v50 = vrot.slane %v36, %v49
    %v51 = vlaneseq
    %v52 = vshrl.u32 %v51, 7
    %v53 = vsub.s32 4, %v52
    %v54 = vrot.slane %v36, %v53
    %v55 = vlaneseq
    %v56 = vshrl.u32 %v55, 7
    %v57 = vsub.s32 0, %v56
    %v58 = vrot.slane %v42, %v57
    %v59 = vlaneseq
    %v60 = vshrl.u32 %v59, 7
    %v61 = vsub.s32 0, %v60
    %v62 = vrot.slane %v46, %v61
    %v63 = vlaneseq
    %v64 = vshrl.u32 %v63, 7
    %v65 = vsub.s32 0, %v64
    %v66 = vrot.slane %v50, %v65
    %v67 = vlaneseq
    %v68 = vshrl.u32 %v67, 7
    %v69 = vsub.s32 0, %v68
    %v70 = vrot.slane %v54, %v69
    %vm71 = vcmp.eq.s32.totalorder %v38, %v58
    %vm72 = vcmp.eq.s32.totalorder %v38, %v62
    %vm73 = vcmp.eq.s32.totalorder %v38, %v66
    %vm74 = vcmp.eq.s32.totalorder %v38, %v70
    %v77 = vcombine.high %v31, %v31
    %v78 = vcombine.high %v32, %v32
    %v81 = vsel %vm71, %v31, 1.0
    %v82 = vsel %vm72, %v77, 1.0
    %v83 = vsel %vm73, %v32, 1.0
    %v84 = vsel %vm74, %v78, 1.0
    %v85 = vsub.f32 1.0, %v81
    %v86 = vsub.f32 1.0, %v82
    %v87 = vsub.f32 1.0, %v83
    %v88 = vsub.f32 1.0, %v84
    %v89 = vmul.f32 %v85, %v85
    %v90 = vmul.f32 %v86, %v86
    %v91 = vmul.f32 %v87, %v87
    %v92 = vmul.f32 %v88, %v88
    %v93 = vld [vmem:[#allocation2] sm:$0xff]
    %v94 = vld [vmem:[#allocation2 + $0x8] sm:$0xff]
    %v95 = vlog2.pop %v81
    %v96 = vmul.f32 %v95, 0.6931472
    %v97 = vlog2.pop %v82
    %v98 = vmul.f32 %v97, 0.6931472
    %v99 = vlog2.pop %v83
    %v100 = vmul.f32 %v99, 0.6931472
    %v101 = vlog2.pop %v84
    %v102 = vmul.f32 %v101, 0.6931472
    %v103 = vmul.f32 %v89, %v96
    %v104 = vmul.f32 %v90, %v98
    %v105 = vmul.f32 %v91, %v100
    %v106 = vmul.f32 %v92, %v102
    %v111 = vcombine.low %v103, %v104
    %v112 = vcombine.low %v105, %v106
    %v115 = vadd.f32 %v93, %v111
    %v116 = vadd.f32 %v94, %v112
    %117 = vst [vmem:[#allocation2] sm:$0xff] %v115
    %118 = vst [vmem:[#allocation2 + $0x8] sm:$0xff] %v116
    // Predicated region
    $region18: #{tpu_custom_call.1} parent=1 // pred_check
      %p119 = pneg %p25
    $region19: #{tpu_custom_call.1} parent=1 // pred_check_branch
      %121 = sbr.rel (%p119) target = $region21
    $region20: #{tpu_custom_call.1} parent=1 // pred_region
      %v122 = vld [vmem:[#allocation2] sm:$0xff]
      %v123 = vld [vmem:[#allocation2 + $0x8] sm:$0xff]
      %v126 = vcombine.high %v122, %v122
      %v127 = vcombine.high %v123, %v123
      %vm130 = vcmask 1043456
      %v131 = vsel %vm130, %v122, 0.0
      %v132 = vsel %vm130, %v126, 0.0
      %v133 = vadd.f32 %v131, %v132
      %134 = vadd.xlane.f32.xlu0 %v133
      %v135 = vpop.xlane.xlu0 %134
      %v136 = vsel %vm130, %v123, 0.0
      %v137 = vsel %vm130, %v127, 0.0
      %v138 = vadd.f32 %v136, %v137
      %139 = vadd.xlane.f32.xlu0 %v138
      %v140 = vpop.xlane.xlu0 %139
      %v141 = vsel %vm130, %v135, 0.0
      %v142 = vrot.slane %v141, 4
      %v143 = vadd.f32 %v141, %v142
      %v144 = vrot.slane %v143, 2
      %v145 = vadd.f32 %v143, %v144
      %v146 = vrot.slane %v145, 1
      %v147 = vadd.f32 %v145, %v146
      %v148 = vsel %vm130, %v140, 0.0
      %v149 = vrot.slane %v148, 4
      %v150 = vadd.f32 %v148, %v149
      %v151 = vrot.slane %v150, 2
      %v152 = vadd.f32 %v150, %v151
      %v153 = vrot.slane %v152, 1
      %v154 = vadd.f32 %v152, %v153
      %v155 = vsub.f32 0.0, %v147
      %v156 = vsub.f32 0.0, %v154
      %vm157 = vcmask 0
      %158 = vst.msk [vmem:[%s2] sm:$0x1] %vm157, %v155
      %159 = vst.msk [vmem:[%s2 + $0x1] sm:$0x1] %vm157, %v156
    $region21: #{tpu_custom_call.1} parent=1 // pred_fallthru
      _
    // Predicated region
    $region22: #{tpu_custom_call.1} parent=1 // pred_check
      _
    $region23: #{tpu_custom_call.1} parent=1 // pred_check_branch
      %161 = sbr.rel (0) target = $region25
    $region24: #{tpu_custom_call.1} parent=1 // pred_region
      _
    $region25: #{tpu_custom_call.1} parent=1 // pred_fallthru
      _
    // Predicated region
    $region26: #{tpu_custom_call.1} parent=1 // pred_check
      _
    $region27: #{tpu_custom_call.1} parent=1 // pred_check_branch
      %163 = sbr.rel (0) target = $region29
    $region28: #{tpu_custom_call.1} parent=1 // pred_region
      _
    $region29: #{tpu_custom_call.1} parent=1 // pred_fallthru
      _
    %164 = vsyncpa [#allocation4], 1

</llo_original>
